<compile_context>
chip_gen: v5e
topology: v5e:2x2
jax: 0.10.0
libtpu: 0.0.40
codegen_flags: <defaults>
</compile_context>

<pallas_src>
import jax
import jax.numpy as jnp
from jax.experimental import pallas as pl
from jax.experimental.pallas import tpu as pltpu


# ----------------------------- hyperparameters (small) -----------------------------
B = 2              # batch
C = 4              # image channels
H = W = 8          # image spatial
IMAGE_FT = 64      # synthetic backbone feature size  (torch default branch: 2048)
OTHER_LEN = 16     # other_features_length            (torch: 62)
FC1_OUT = 32       # fc_1 out                         (torch: 200)
FC2_OUT = 64       # fc_2 out                         (torch: 400)
NUM_EMB = 48       # num_embeddings                   (torch: 6000)
TEXT_SIZE = 32     # text_size                        (torch: 400)
TEXT_HID = 32      # text_hidden_size                 (torch: 400)
SEQ = 4            # text sequence length
NUM_CLASSES = 8    # num_classes                      (torch: 27)
ALL_FT = IMAGE_FT + FC2_OUT + TEXT_HID


# --------------------------------- Pallas kernel -----------------------------------
def model_kernel(
    x_ref,        # (B, C, H*W)            image, spatial on the lane axis
    other_ref,    # (B, OTHER_LEN)
    textT_ref,    # (SEQ*B, NUM_EMB)       time-major flattened text
    wimg_ref, bimg_ref,        # (C, IMAGE_FT), (1, IMAGE_FT)
    w1_ref, b1_ref,            # (OTHER_LEN, FC1_OUT), (1, FC1_OUT)
    w2_ref, b2_ref,            # (FC1_OUT, FC2_OUT), (1, FC2_OUT)
    wg_ref, bg_ref,            # fused: wemb@wih (NUM_EMB, 4H), bemb@wih + bih + bhh (1, 4H)
    whh_ref,                   # (TEXT_HID, 4H)
    wi2o_t_ref, wi2o_h_ref, bi2o_ref,   # fused i2o: (NUM_EMB, H), (H, H), (1, H)
    wfc_img_ref, wfc_o_ref, wfc_txt_ref, bfc_ref,   # split classifier weights
    out_ref,                   # (B, NUM_CLASSES)
):
    f32 = jnp.float32
    hsz = TEXT_HID

    # ---- image branch: global average pool (lane-axis reduction) + 1x1-conv matmul ----
    x_gap = jnp.mean(x_ref[...], axis=-1)                                    # (B, C)
    image_ft = jnp.dot(x_gap, wimg_ref[...],
                       preferred_element_type=f32) + bimg_ref[...]           # (B, IMAGE_FT)

    # ---- other-features branch: fc_1 -> relu -> fc_2 -> relu ----
    o1 = jnp.maximum(
        jnp.dot(other_ref[...], w1_ref[...], preferred_element_type=f32) + b1_ref[...], 0.0)
    o2 = jnp.maximum(
        jnp.dot(o1, w2_ref[...], preferred_element_type=f32) + b2_ref[...], 0.0)  # (B, FC2_OUT)

    # ---- text branch: batched non-recurrent gate contribution for all timesteps ----
    # (SEQ*B, NUM_EMB) @ (NUM_EMB, 4H) : fills full sublanes, one MXU push outside the loop.
    gates_x = jnp.dot(textT_ref[...], wg_ref[...],
                      preferred_element_type=f32) + bg_ref[...]              # (SEQ*B, 4H)

    h = jnp.zeros((B, hsz), f32)
    c = jnp.zeros((B, hsz), f32)
    h_before_last = h
    for t in range(SEQ):  # static, unrolled at trace time
        if t == SEQ - 1:
            h_before_last = h  # hidden state *before* the last cell update (torch semantics)
        # only the true recurrence stays in the serial chain
        gates = gates_x[t * B:(t + 1) * B, :] + jnp.dot(
            h, whh_ref[...], preferred_element_type=f32)                     # (B, 4H)
        # one full-vreg sigmoid + one full-vreg tanh (EUP), then aligned lane slices
        sig = jax.nn.sigmoid(gates)
        tnh = jnp.tanh(gates)
        i_g = sig[:, 0 * hsz:1 * hsz]
        f_g = sig[:, 1 * hsz:2 * hsz]
        g_g = tnh[:, 2 * hsz:3 * hsz]
        o_g = sig[:, 3 * hsz:4 * hsz]
        c = f_g * c + i_g * g_g
        h = o_g * jnp.tanh(c)

    # ---- i2o output, last timestep only, concat replaced by split-weight dots ----
    text_last = textT_ref[pl.ds((SEQ - 1) * B, B), :]                        # (B, NUM_EMB)
    text_ft = (jnp.dot(text_last, wi2o_t_ref[...], preferred_element_type=f32)
               + jnp.dot(h_before_last, wi2o_h_ref[...], preferred_element_type=f32)
               + bi2o_ref[...])                                              # (B, TEXT_HID)

    # ---- classifier via split weights (no concat); dropout = identity in eval mode ----
    scores = (jnp.dot(image_ft, wfc_img_ref[...], preferred_element_type=f32)
              + jnp.dot(o2, wfc_o_ref[...], preferred_element_type=f32)
              + jnp.dot(text_ft, wfc_txt_ref[...], preferred_element_type=f32)
              + bfc_ref[...])                                                # (B, NUM_CLASSES)
    out_ref[...] = scores.astype(out_ref.dtype)


# ----------------------------------- wrapper ---------------------------------------
@jax.jit
def model_forward(x_nchw, other_ft, text, params):
    bsz, ch, hh, ww = x_nchw.shape
    seq = text.shape[1]

    # image: keep channels on sublanes, spatial on lanes (pure reshape, no transpose)
    x_flat = x_nchw.reshape(bsz, ch, hh * ww)
    # text: time-major flatten so per-step rows are contiguous sublane blocks
    textT = jnp.transpose(text, (1, 0, 2)).reshape(seq * bsz, text.shape[2])

    # one-time weight fusions / splits (plain XLA ops, hoisted out of the kernel)
    wemb, bemb = params["wemb"], params["bemb"]
    w_gates = wemb @ params["wih"]                                     # (NUM_EMB, 4H)
    b_gates = bemb @ params["wih"] + params["bih"] + params["bhh"]     # (1, 4H)
    wi2o_t = wemb @ params["wi2o"][:TEXT_SIZE]                         # (NUM_EMB, H)
    wi2o_h = params["wi2o"][TEXT_SIZE:]                                # (H, H)
    bi2o_f = bemb @ params["wi2o"][:TEXT_SIZE] + params["bi2o"]        # (1, H)
    wfc_img = params["wfc"][:IMAGE_FT]
    wfc_o = params["wfc"][IMAGE_FT:IMAGE_FT + FC2_OUT]
    wfc_txt = params["wfc"][IMAGE_FT + FC2_OUT:]

    args = (
        x_flat, other_ft, textT,
        params["wimg"], params["bimg"],
        params["w1"], params["b1"],
        params["w2"], params["b2"],
        w_gates, b_gates,
        params["whh"],
        wi2o_t, wi2o_h, bi2o_f,
        wfc_img, wfc_o, wfc_txt, params["bfc"],
    )
    vmem = pl.BlockSpec(memory_space=pltpu.MemorySpace.VMEM)
    return pl.pallas_call(
        model_kernel,
        out_shape=jax.ShapeDtypeStruct((bsz, NUM_CLASSES), jnp.float32),
        in_specs=[vmem] * len(args),
        out_specs=vmem,
    )(*args)


# ------------------------- pure-JAX reference (for checking) -----------------------
def reference_forward(x_nchw, other_ft, text, params):
    x_gap = jnp.mean(x_nchw, axis=(2, 3))                               # (B, C)
    image_ft = x_gap @ params["wimg"] + params["bimg"]

    o1 = jax.nn.relu(other_ft @ params["w1"] + params["b1"])
    o2 = jax.nn.relu(o1 @ params["w2"] + params["b2"])

    bsz = x_nchw.shape[0]
    h = jnp.zeros((bsz, TEXT_HID), jnp.float32)
    c = jnp.zeros((bsz, TEXT_HID), jnp.float32)
    text_ft = jnp.zeros((bsz, TEXT_HID), jnp.float32)
    for t in range(SEQ):
        emb = text[:, t, :] @ params["wemb"] + params["bemb"]
        combined = jnp.concatenate([emb, h], axis=1)
        gates = emb @ params["wih"] + params["bih"] + h @ params["whh"] + params["bhh"]
        i_g = jax.nn.sigmoid(gates[:, 0 * TEXT_HID:1 * TEXT_HID])
        f_g = jax.nn.sigmoid(gates[:, 1 * TEXT_HID:2 * TEXT_HID])
        g_g = jnp.tanh(gates[:, 2 * TEXT_HID:3 * TEXT_HID])
        o_g = jax.nn.sigmoid(gates[:, 3 * TEXT_HID:4 * TEXT_HID])
        c = f_g * c + i_g * g_g
        h = o_g * jnp.tanh(c)
        text_ft = combined @ params["wi2o"] + params["bi2o"]

    all_ft = jnp.concatenate([image_ft, o2, text_ft], axis=1)
    return all_ft @ params["wfc"] + params["bfc"]


# ------------------------------------ params ---------------------------------------
def init_params(key):
    def lin(k, n_in, n_out, scale=0.05):
        kw, kb = jax.random.split(k)
        w = scale * jax.random.normal(kw, (n_in, n_out), jnp.float32)   # pre-transposed (in, out)
        b = scale * jax.random.normal(kb, (1, n_out), jnp.float32)
        return w, b

    ks = jax.random.split(key, 9)
    p = {}
    p["wimg"], p["bimg"] = lin(ks[0], C, IMAGE_FT)
    p["w1"], p["b1"] = lin(ks[1], OTHER_LEN, FC1_OUT)
    p["w2"], p["b2"] = lin(ks[2], FC1_OUT, FC2_OUT)
    p["wemb"], p["bemb"] = lin(ks[3], NUM_EMB, TEXT_SIZE)
    p["wih"], p["bih"] = lin(ks[4], TEXT_SIZE, 4 * TEXT_HID)
    p["whh"], p["bhh"] = lin(ks[5], TEXT_HID, 4 * TEXT_HID)
    p["wi2o"], p["bi2o"] = lin(ks[6], TEXT_SIZE + TEXT_HID, TEXT_HID)
    p["wfc"], p["bfc"] = lin(ks[7], ALL_FT, NUM_CLASSES)
    return p


if __name__ == "__main__":
    key = jax.random.PRNGKey(0)
    k_x, k_o, k_t, k_p = jax.random.split(key, 4)

    x = jax.random.normal(k_x, (B, C, H, W), jnp.float32)          # NCHW like torch
    other_ft = jax.random.normal(k_o, (B, OTHER_LEN), jnp.float32)
    text = jax.random.normal(k_t, (B, SEQ, NUM_EMB), jnp.float32)
    params = init_params(k_p)

    scores = model_forward(x, other_ft, text, params)
    scores = jax.block_until_ready(scores)

    ref = reference_forward(x, other_ft, text, params)
    assert scores.shape == (B, NUM_CLASSES)
    assert jnp.allclose(scores, ref, atol=1e-4, rtol=1e-4), "mismatch vs reference"
    print("KERNEL_OK")
</pallas_src>

<mosaic_0001>
module attributes {stable_mosaic.version = 11 : i64} {
  func.func @model_kernel(%arg0: memref<2x4x64xf32, #tpu.memory_space<vmem>>, %arg1: memref<2x16xf32, #tpu.memory_space<vmem>>, %arg2: memref<8x48xf32, #tpu.memory_space<vmem>>, %arg3: memref<4x64xf32, #tpu.memory_space<vmem>>, %arg4: memref<1x64xf32, #tpu.memory_space<vmem>>, %arg5: memref<16x32xf32, #tpu.memory_space<vmem>>, %arg6: memref<1x32xf32, #tpu.memory_space<vmem>>, %arg7: memref<32x64xf32, #tpu.memory_space<vmem>>, %arg8: memref<1x64xf32, #tpu.memory_space<vmem>>, %arg9: memref<48x128xf32, #tpu.memory_space<vmem>>, %arg10: memref<1x128xf32, #tpu.memory_space<vmem>>, %arg11: memref<32x128xf32, #tpu.memory_space<vmem>>, %arg12: memref<48x32xf32, #tpu.memory_space<vmem>>, %arg13: memref<32x32xf32, #tpu.memory_space<vmem>>, %arg14: memref<1x32xf32, #tpu.memory_space<vmem>>, %arg15: memref<64x8xf32, #tpu.memory_space<vmem>>, %arg16: memref<64x8xf32, #tpu.memory_space<vmem>>, %arg17: memref<32x8xf32, #tpu.memory_space<vmem>>, %arg18: memref<1x8xf32, #tpu.memory_space<vmem>>, %arg19: memref<2x8xf32, #tpu.memory_space<vmem>>) attributes {dimension_semantics = [], scalar_prefetch = 0 : i64, scratch_operands = 0 : i64, tpu.core_type = #tpu.core_type<tc>} {
    %c0 = arith.constant 0 : index
    %c0_0 = arith.constant 0 : index
    %c0_1 = arith.constant 0 : index
    %0 = vector.load %arg0[%c0, %c0_0, %c0_1] : memref<2x4x64xf32, #tpu.memory_space<vmem>>, vector<2x4x64xf32>
    %cst = arith.constant dense<0.000000e+00> : vector<2x4xf32>
    %1 = vector.multi_reduction <add>, %0, %cst [2] : vector<2x4x64xf32> to vector<2x4xf32>
    %cst_2 = arith.constant 6.400000e+01 : f32
    %2 = vector.broadcast %cst_2 : f32 to vector<2x4xf32>
    %3 = arith.divf %1, %2 : vector<2x4xf32>
    %c0_3 = arith.constant 0 : index
    %c0_4 = arith.constant 0 : index
    %4 = vector.load %arg3[%c0_3, %c0_4] : memref<4x64xf32, #tpu.memory_space<vmem>>, vector<4x64xf32>
    %cst_5 = arith.constant dense<0.000000e+00> : vector<2x64xf32>
    %5 = tpu.matmul %3, %4, %cst_5 {dimension_numbers = #tpu.dot_dimension_numbers<[1], [0], [0], [1], [0, 0, 1, 1], [], []>} : vector<2x4xf32>, vector<4x64xf32>, vector<2x64xf32> -> vector<2x64xf32>
    %c0_6 = arith.constant 0 : index
    %c0_7 = arith.constant 0 : index
    %6 = vector.load %arg4[%c0_6, %c0_7] : memref<1x64xf32, #tpu.memory_space<vmem>>, vector<1x64xf32>
    %7 = vector.broadcast %6 : vector<1x64xf32> to vector<2x64xf32>
    %8 = arith.addf %5, %7 : vector<2x64xf32>
    %c0_8 = arith.constant 0 : index
    %c0_9 = arith.constant 0 : index
    %9 = vector.load %arg1[%c0_8, %c0_9] : memref<2x16xf32, #tpu.memory_space<vmem>>, vector<2x16xf32>
    %c0_10 = arith.constant 0 : index
    %c0_11 = arith.constant 0 : index
    %10 = vector.load %arg5[%c0_10, %c0_11] : memref<16x32xf32, #tpu.memory_space<vmem>>, vector<16x32xf32>
    %cst_12 = arith.constant dense<0.000000e+00> : vector<2x32xf32>
    %11 = tpu.matmul %9, %10, %cst_12 {dimension_numbers = #tpu.dot_dimension_numbers<[1], [0], [0], [1], [0, 0, 1, 1], [], []>} : vector<2x16xf32>, vector<16x32xf32>, vector<2x32xf32> -> vector<2x32xf32>
    %c0_13 = arith.constant 0 : index
    %c0_14 = arith.constant 0 : index
    %12 = vector.load %arg6[%c0_13, %c0_14] : memref<1x32xf32, #tpu.memory_space<vmem>>, vector<1x32xf32>
    %13 = vector.broadcast %12 : vector<1x32xf32> to vector<2x32xf32>
    %14 = arith.addf %11, %13 : vector<2x32xf32>
    %cst_15 = arith.constant 0.000000e+00 : f32
    %15 = vector.broadcast %cst_15 : f32 to vector<2x32xf32>
    %16 = arith.maximumf %14, %15 : vector<2x32xf32>
    %c0_16 = arith.constant 0 : index
    %c0_17 = arith.constant 0 : index
    %17 = vector.load %arg7[%c0_16, %c0_17] : memref<32x64xf32, #tpu.memory_space<vmem>>, vector<32x64xf32>
    %cst_18 = arith.constant dense<0.000000e+00> : vector<2x64xf32>
    %18 = tpu.matmul %16, %17, %cst_18 {dimension_numbers = #tpu.dot_dimension_numbers<[1], [0], [0], [1], [0, 0, 1, 1], [], []>} : vector<2x32xf32>, vector<32x64xf32>, vector<2x64xf32> -> vector<2x64xf32>
    %c0_19 = arith.constant 0 : index
    %c0_20 = arith.constant 0 : index
    %19 = vector.load %arg8[%c0_19, %c0_20] : memref<1x64xf32, #tpu.memory_space<vmem>>, vector<1x64xf32>
    %20 = vector.broadcast %19 : vector<1x64xf32> to vector<2x64xf32>
    %21 = arith.addf %18, %20 : vector<2x64xf32>
    %cst_21 = arith.constant 0.000000e+00 : f32
    %22 = vector.broadcast %cst_21 : f32 to vector<2x64xf32>
    %23 = arith.maximumf %21, %22 : vector<2x64xf32>
    %c0_22 = arith.constant 0 : index
    %c0_23 = arith.constant 0 : index
    %24 = vector.load %arg2[%c0_22, %c0_23] : memref<8x48xf32, #tpu.memory_space<vmem>>, vector<8x48xf32>
    %c0_24 = arith.constant 0 : index
    %c0_25 = arith.constant 0 : index
    %25 = vector.load %arg9[%c0_24, %c0_25] : memref<48x128xf32, #tpu.memory_space<vmem>>, vector<48x128xf32>
    %cst_26 = arith.constant dense<0.000000e+00> : vector<8x128xf32>
    %26 = tpu.matmul %24, %25, %cst_26 {dimension_numbers = #tpu.dot_dimension_numbers<[1], [0], [0], [1], [0, 0, 1, 1], [], []>} : vector<8x48xf32>, vector<48x128xf32>, vector<8x128xf32> -> vector<8x128xf32>
    %c0_27 = arith.constant 0 : index
    %c0_28 = arith.constant 0 : index
    %27 = vector.load %arg10[%c0_27, %c0_28] : memref<1x128xf32, #tpu.memory_space<vmem>>, vector<1x128xf32>
    %28 = vector.broadcast %27 : vector<1x128xf32> to vector<8x128xf32>
    %29 = arith.addf %26, %28 : vector<8x128xf32>
    %cst_29 = arith.constant 0.000000e+00 : f32
    %30 = vector.broadcast %cst_29 : f32 to vector<2x32xf32>
    %cst_30 = arith.constant 0.000000e+00 : f32
    %31 = vector.broadcast %cst_30 : f32 to vector<2x32xf32>
    %32 = vector.extract_strided_slice %29 {offsets = [0, 0], sizes = [2, 128], strides = [1, 1]} : vector<8x128xf32> to vector<2x128xf32>
    %c0_31 = arith.constant 0 : index
    %c0_32 = arith.constant 0 : index
    %33 = vector.load %arg11[%c0_31, %c0_32] : memref<32x128xf32, #tpu.memory_space<vmem>>, vector<32x128xf32>
    %cst_33 = arith.constant dense<0.000000e+00> : vector<2x128xf32>
    %34 = tpu.matmul %30, %33, %cst_33 {dimension_numbers = #tpu.dot_dimension_numbers<[1], [0], [0], [1], [0, 0, 1, 1], [], []>} : vector<2x32xf32>, vector<32x128xf32>, vector<2x128xf32> -> vector<2x128xf32>
    %35 = arith.addf %32, %34 : vector<2x128xf32>
    %36 = arith.negf %35 : vector<2x128xf32>
    %37 = math.exp %36 : vector<2x128xf32>
    %cst_34 = arith.constant 1.000000e+00 : f32
    %38 = vector.broadcast %cst_34 : f32 to vector<2x128xf32>
    %39 = arith.addf %38, %37 : vector<2x128xf32>
    %40 = arith.divf %38, %39 : vector<2x128xf32>
    %41 = math.tanh %35 : vector<2x128xf32>
    %42 = vector.extract_strided_slice %40 {offsets = [0, 0], sizes = [2, 32], strides = [1, 1]} : vector<2x128xf32> to vector<2x32xf32>
    %43 = vector.extract_strided_slice %40 {offsets = [0, 32], sizes = [2, 32], strides = [1, 1]} : vector<2x128xf32> to vector<2x32xf32>
    %44 = vector.extract_strided_slice %41 {offsets = [0, 64], sizes = [2, 32], strides = [1, 1]} : vector<2x128xf32> to vector<2x32xf32>
    %45 = vector.extract_strided_slice %40 {offsets = [0, 96], sizes = [2, 32], strides = [1, 1]} : vector<2x128xf32> to vector<2x32xf32>
    %46 = arith.mulf %43, %31 : vector<2x32xf32>
    %47 = arith.mulf %42, %44 : vector<2x32xf32>
    %48 = arith.addf %46, %47 : vector<2x32xf32>
    %49 = math.tanh %48 : vector<2x32xf32>
    %50 = arith.mulf %45, %49 : vector<2x32xf32>
    %51 = vector.extract_strided_slice %29 {offsets = [2, 0], sizes = [2, 128], strides = [1, 1]} : vector<8x128xf32> to vector<2x128xf32>
    %c0_35 = arith.constant 0 : index
    %c0_36 = arith.constant 0 : index
    %52 = vector.load %arg11[%c0_35, %c0_36] : memref<32x128xf32, #tpu.memory_space<vmem>>, vector<32x128xf32>
    %cst_37 = arith.constant dense<0.000000e+00> : vector<2x128xf32>
    %53 = tpu.matmul %50, %52, %cst_37 {dimension_numbers = #tpu.dot_dimension_numbers<[1], [0], [0], [1], [0, 0, 1, 1], [], []>} : vector<2x32xf32>, vector<32x128xf32>, vector<2x128xf32> -> vector<2x128xf32>
    %54 = arith.addf %51, %53 : vector<2x128xf32>
    %55 = arith.negf %54 : vector<2x128xf32>
    %56 = math.exp %55 : vector<2x128xf32>
    %cst_38 = arith.constant 1.000000e+00 : f32
    %57 = vector.broadcast %cst_38 : f32 to vector<2x128xf32>
    %58 = arith.addf %57, %56 : vector<2x128xf32>
    %59 = arith.divf %57, %58 : vector<2x128xf32>
    %60 = math.tanh %54 : vector<2x128xf32>
    %61 = vector.extract_strided_slice %59 {offsets = [0, 0], sizes = [2, 32], strides = [1, 1]} : vector<2x128xf32> to vector<2x32xf32>
    %62 = vector.extract_strided_slice %59 {offsets = [0, 32], sizes = [2, 32], strides = [1, 1]} : vector<2x128xf32> to vector<2x32xf32>
    %63 = vector.extract_strided_slice %60 {offsets = [0, 64], sizes = [2, 32], strides = [1, 1]} : vector<2x128xf32> to vector<2x32xf32>
    %64 = vector.extract_strided_slice %59 {offsets = [0, 96], sizes = [2, 32], strides = [1, 1]} : vector<2x128xf32> to vector<2x32xf32>
    %65 = arith.mulf %62, %48 : vector<2x32xf32>
    %66 = arith.mulf %61, %63 : vector<2x32xf32>
    %67 = arith.addf %65, %66 : vector<2x32xf32>
    %68 = math.tanh %67 : vector<2x32xf32>
    %69 = arith.mulf %64, %68 : vector<2x32xf32>
    %70 = vector.extract_strided_slice %29 {offsets = [4, 0], sizes = [2, 128], strides = [1, 1]} : vector<8x128xf32> to vector<2x128xf32>
    %c0_39 = arith.constant 0 : index
    %c0_40 = arith.constant 0 : index
    %71 = vector.load %arg11[%c0_39, %c0_40] : memref<32x128xf32, #tpu.memory_space<vmem>>, vector<32x128xf32>
    %cst_41 = arith.constant dense<0.000000e+00> : vector<2x128xf32>
    %72 = tpu.matmul %69, %71, %cst_41 {dimension_numbers = #tpu.dot_dimension_numbers<[1], [0], [0], [1], [0, 0, 1, 1], [], []>} : vector<2x32xf32>, vector<32x128xf32>, vector<2x128xf32> -> vector<2x128xf32>
    %73 = arith.addf %70, %72 : vector<2x128xf32>
    %74 = arith.negf %73 : vector<2x128xf32>
    %75 = math.exp %74 : vector<2x128xf32>
    %cst_42 = arith.constant 1.000000e+00 : f32
    %76 = vector.broadcast %cst_42 : f32 to vector<2x128xf32>
    %77 = arith.addf %76, %75 : vector<2x128xf32>
    %78 = arith.divf %76, %77 : vector<2x128xf32>
    %79 = math.tanh %73 : vector<2x128xf32>
    %80 = vector.extract_strided_slice %78 {offsets = [0, 0], sizes = [2, 32], strides = [1, 1]} : vector<2x128xf32> to vector<2x32xf32>
    %81 = vector.extract_strided_slice %78 {offsets = [0, 32], sizes = [2, 32], strides = [1, 1]} : vector<2x128xf32> to vector<2x32xf32>
    %82 = vector.extract_strided_slice %79 {offsets = [0, 64], sizes = [2, 32], strides = [1, 1]} : vector<2x128xf32> to vector<2x32xf32>
    %83 = vector.extract_strided_slice %78 {offsets = [0, 96], sizes = [2, 32], strides = [1, 1]} : vector<2x128xf32> to vector<2x32xf32>
    %84 = arith.mulf %81, %67 : vector<2x32xf32>
    %85 = arith.mulf %80, %82 : vector<2x32xf32>
    %86 = arith.addf %84, %85 : vector<2x32xf32>
    %87 = math.tanh %86 : vector<2x32xf32>
    %88 = arith.mulf %83, %87 : vector<2x32xf32>
    %c6 = arith.constant 6 : index
    %c0_43 = arith.constant 0 : index
    %89 = vector.load %arg2[%c6, %c0_43] : memref<8x48xf32, #tpu.memory_space<vmem>>, vector<2x48xf32>
    %c0_44 = arith.constant 0 : index
    %c0_45 = arith.constant 0 : index
    %90 = vector.load %arg12[%c0_44, %c0_45] : memref<48x32xf32, #tpu.memory_space<vmem>>, vector<48x32xf32>
    %cst_46 = arith.constant dense<0.000000e+00> : vector<2x32xf32>
    %91 = tpu.matmul %89, %90, %cst_46 {dimension_numbers = #tpu.dot_dimension_numbers<[1], [0], [0], [1], [0, 0, 1, 1], [], []>} : vector<2x48xf32>, vector<48x32xf32>, vector<2x32xf32> -> vector<2x32xf32>
    %c0_47 = arith.constant 0 : index
    %c0_48 = arith.constant 0 : index
    %92 = vector.load %arg13[%c0_47, %c0_48] : memref<32x32xf32, #tpu.memory_space<vmem>>, vector<32x32xf32>
    %cst_49 = arith.constant dense<0.000000e+00> : vector<2x32xf32>
    %93 = tpu.matmul %88, %92, %cst_49 {dimension_numbers = #tpu.dot_dimension_numbers<[1], [0], [0], [1], [0, 0, 1, 1], [], []>} : vector<2x32xf32>, vector<32x32xf32>, vector<2x32xf32> -> vector<2x32xf32>
    %94 = arith.addf %91, %93 : vector<2x32xf32>
    %c0_50 = arith.constant 0 : index
    %c0_51 = arith.constant 0 : index
    %95 = vector.load %arg14[%c0_50, %c0_51] : memref<1x32xf32, #tpu.memory_space<vmem>>, vector<1x32xf32>
    %96 = vector.broadcast %95 : vector<1x32xf32> to vector<2x32xf32>
    %97 = arith.addf %94, %96 : vector<2x32xf32>
    %c0_52 = arith.constant 0 : index
    %c0_53 = arith.constant 0 : index
    %98 = vector.load %arg15[%c0_52, %c0_53] : memref<64x8xf32, #tpu.memory_space<vmem>>, vector<64x8xf32>
    %cst_54 = arith.constant dense<0.000000e+00> : vector<2x8xf32>
    %99 = tpu.matmul %8, %98, %cst_54 {dimension_numbers = #tpu.dot_dimension_numbers<[1], [0], [0], [1], [0, 0, 1, 1], [], []>} : vector<2x64xf32>, vector<64x8xf32>, vector<2x8xf32> -> vector<2x8xf32>
    %c0_55 = arith.constant 0 : index
    %c0_56 = arith.constant 0 : index
    %100 = vector.load %arg16[%c0_55, %c0_56] : memref<64x8xf32, #tpu.memory_space<vmem>>, vector<64x8xf32>
    %cst_57 = arith.constant dense<0.000000e+00> : vector<2x8xf32>
    %101 = tpu.matmul %23, %100, %cst_57 {dimension_numbers = #tpu.dot_dimension_numbers<[1], [0], [0], [1], [0, 0, 1, 1], [], []>} : vector<2x64xf32>, vector<64x8xf32>, vector<2x8xf32> -> vector<2x8xf32>
    %102 = arith.addf %99, %101 : vector<2x8xf32>
    %c0_58 = arith.constant 0 : index
    %c0_59 = arith.constant 0 : index
    %103 = vector.load %arg17[%c0_58, %c0_59] : memref<32x8xf32, #tpu.memory_space<vmem>>, vector<32x8xf32>
    %cst_60 = arith.constant dense<0.000000e+00> : vector<2x8xf32>
    %104 = tpu.matmul %97, %103, %cst_60 {dimension_numbers = #tpu.dot_dimension_numbers<[1], [0], [0], [1], [0, 0, 1, 1], [], []>} : vector<2x32xf32>, vector<32x8xf32>, vector<2x8xf32> -> vector<2x8xf32>
    %105 = arith.addf %102, %104 : vector<2x8xf32>
    %c0_61 = arith.constant 0 : index
    %c0_62 = arith.constant 0 : index
    %106 = vector.load %arg18[%c0_61, %c0_62] : memref<1x8xf32, #tpu.memory_space<vmem>>, vector<1x8xf32>
    %107 = vector.broadcast %106 : vector<1x8xf32> to vector<2x8xf32>
    %108 = arith.addf %105, %107 : vector<2x8xf32>
    %c0_63 = arith.constant 0 : index
    %c0_64 = arith.constant 0 : index
    %109 = vector.load %arg19[%c0_63, %c0_64] : memref<2x8xf32, #tpu.memory_space<vmem>>, vector<2x8xf32>
    tpu.vector_store %arg19[%c0_63, %c0_64], %108 {strides = array<i32>} : memref<2x8xf32, #tpu.memory_space<vmem>>, vector<2x8xf32>,
    return
  }
}

</mosaic_0001>

<llo_original>
// kernel: model_forward.1
$region0: #{model_forward.1}
  #allocation0 [shape = 'u32[]', space=smem, size = 0x4, offset = 0x4, fixed_abs, tag = 'smem constant byte address 0x4 - core index']
  #allocation1 [shape = 'u32[72,128]{1,0:T(1,128)}', space=vmem, size = 0x9000, scoped, tag = 'internal scratch']
  %s0 = inlined_call_operand.vmem [shape: f32[2,4,64], index: 0, kind: input, shape index: {}]
  %s1 = inlined_call_operand.vmem [shape: f32[2,16], index: 1, kind: input, shape index: {}]
  %s2 = inlined_call_operand.vmem [shape: f32[8,48], index: 2, kind: input, shape index: {}]
  %s3 = inlined_call_operand.vmem [shape: f32[4,64], index: 3, kind: input, shape index: {}]
  %s4 = inlined_call_operand.vmem [shape: f32[1,64], index: 4, kind: input, shape index: {}]
  %s5 = inlined_call_operand.vmem [shape: f32[16,32], index: 5, kind: input, shape index: {}]
  %s6 = inlined_call_operand.vmem [shape: f32[1,32], index: 6, kind: input, shape index: {}]
  %s7 = inlined_call_operand.vmem [shape: f32[32,64], index: 7, kind: input, shape index: {}]
  %s8 = inlined_call_operand.vmem [shape: f32[1,64], index: 8, kind: input, shape index: {}]
  %s9 = inlined_call_operand.vmem [shape: f32[48,128], index: 9, kind: input, shape index: {}]
  %s10 = inlined_call_operand.vmem [shape: f32[1,128], index: 10, kind: input, shape index: {}]
  %s11 = inlined_call_operand.vmem [shape: f32[32,128], index: 11, kind: input, shape index: {}]
  %s12 = inlined_call_operand.vmem [shape: f32[48,32], index: 12, kind: input, shape index: {}]
  %s13 = inlined_call_operand.vmem [shape: f32[32,32], index: 13, kind: input, shape index: {}]
  %s14 = inlined_call_operand.vmem [shape: f32[1,32], index: 14, kind: input, shape index: {}]
  %s15 = inlined_call_operand.vmem [shape: f32[64,8], index: 15, kind: input, shape index: {}]
  %s16 = inlined_call_operand.vmem [shape: f32[64,8], index: 16, kind: input, shape index: {}]
  %s17 = inlined_call_operand.vmem [shape: f32[32,8], index: 17, kind: input, shape index: {}]
  %s18 = inlined_call_operand.vmem [shape: f32[1,8], index: 18, kind: input, shape index: {}]
  %s19 = inlined_call_operand.hbm [shape: f32[2,8], index: 19, kind: output, shape index: {}]
  %s20 = sld [smem:[#allocation0]]
  $region86: #{model_forward.1} parent=0
    _
  %s22 = ssub.s32 1, %s20
  %s23 = scalar_select 0, %s22, %s20
  $region1: #{model_forward.1} parent=0
    #allocation2 [shape = 'u8[1024]{0}', space=vmem, size = 0x400, scoped, tag = 'output window, operand 0, single buffered']
    #allocation3 [shape = 's32[1]{0}', space=sflag, size = 0x4, scoped, tag = 'scoped memory for model_forward.1']
    %24 = vsyncpa [#allocation3], 0
    // Predicated region
    $region2: #{model_forward.1} parent=1 // pred_check
      _
    $region3: #{model_forward.1} parent=1 // pred_check_branch
      %26 = sbr.rel (0) target = $region5
    $region4: #{model_forward.1} parent=1 // pred_region
      _
    $region5: #{model_forward.1} parent=1 // pred_fallthru
      _
    // Predicated region
    $region6: #{model_forward.1} parent=1 // pred_check
      _
    $region7: #{model_forward.1} parent=1 // pred_check_branch
      %28 = sbr.rel (0) target = $region9
    $region8: #{model_forward.1} parent=1 // pred_region
      _
    $region9: #{model_forward.1} parent=1 // pred_fallthru
      _
    // Predicated region
    $region10: #{model_forward.1} parent=1 // pred_check
      _
    $region11: #{model_forward.1} parent=1 // pred_check_branch
      %30 = sbr.rel (0) target = $region13
    $region12: #{model_forward.1} parent=1 // pred_region
      _
    $region13: #{model_forward.1} parent=1 // pred_fallthru
      _
    // Predicated region
    $region14: #{model_forward.1} parent=1 // pred_check
      _
    $region15: #{model_forward.1} parent=1 // pred_check_branch
      %32 = sbr.rel (0) target = $region17
    $region16: #{model_forward.1} parent=1 // pred_region
      _
    $region17: #{model_forward.1} parent=1 // pred_fallthru
      _
    // Predicated region
    $region18: #{model_forward.1} parent=1 // pred_check
      _
    $region19: #{model_forward.1} parent=1 // pred_check_branch
      %34 = sbr.rel (0) target = $region21
    $region20: #{model_forward.1} parent=1 // pred_region
      _
    $region21: #{model_forward.1} parent=1 // pred_fallthru
      _
    // Predicated region
    $region22: #{model_forward.1} parent=1 // pred_check
      _
    $region23: #{model_forward.1} parent=1 // pred_check_branch
      %36 = sbr.rel (0) target = $region25
    $region24: #{model_forward.1} parent=1 // pred_region
      _
    $region25: #{model_forward.1} parent=1 // pred_fallthru
      _
    // Predicated region
    $region26: #{model_forward.1} parent=1 // pred_check
      _
    $region27: #{model_forward.1} parent=1 // pred_check_branch
      %38 = sbr.rel (0) target = $region29
    $region28: #{model_forward.1} parent=1 // pred_region
      _
    $region29: #{model_forward.1} parent=1 // pred_fallthru
      _
    // Predicated region
    $region30: #{model_forward.1} parent=1 // pred_check
      _
    $region31: #{model_forward.1} parent=1 // pred_check_branch
      %40 = sbr.rel (0) target = $region33
    $region32: #{model_forward.1} parent=1 // pred_region
      _
    $region33: #{model_forward.1} parent=1 // pred_fallthru
      _
    // Predicated region
    $region34: #{model_forward.1} parent=1 // pred_check
      _
    $region35: #{model_forward.1} parent=1 // pred_check_branch
      %42 = sbr.rel (0) target = $region37
    $region36: #{model_forward.1} parent=1 // pred_region
      _
    $region37: #{model_forward.1} parent=1 // pred_fallthru
      _
    // Predicated region
    $region38: #{model_forward.1} parent=1 // pred_check
      _
    $region39: #{model_forward.1} parent=1 // pred_check_branch
      %44 = sbr.rel (0) target = $region41
    $region40: #{model_forward.1} parent=1 // pred_region
      _
    $region41: #{model_forward.1} parent=1 // pred_fallthru
      _
    // Predicated region
    $region42: #{model_forward.1} parent=1 // pred_check
      _
    $region43: #{model_forward.1} parent=1 // pred_check_branch
      %46 = sbr.rel (0) target = $region45
    $region44: #{model_forward.1} parent=1 // pred_region
      _
    $region45: #{model_forward.1} parent=1 // pred_fallthru
      _
    // Predicated region
    $region46: #{model_forward.1} parent=1 // pred_check
      _
    $region47: #{model_forward.1} parent=1 // pred_check_branch
      %48 = sbr.rel (0) target = $region49
    $region48: #{model_forward.1} parent=1 // pred_region
      _
    $region49: #{model_forward.1} parent=1 // pred_fallthru
      _
    // Predicated region
    $region50: #{model_forward.1} parent=1 // pred_check
      _
    $region51: #{model_forward.1} parent=1 // pred_check_branch
      %50 = sbr.rel (0) target = $region53
    $region52: #{model_forward.1} parent=1 // pred_region
      _
    $region53: #{model_forward.1} parent=1 // pred_fallthru
      _
    // Predicated region
    $region54: #{model_forward.1} parent=1 // pred_check
      _
    $region55: #{model_forward.1} parent=1 // pred_check_branch
      %52 = sbr.rel (0) target = $region57
    $region56: #{model_forward.1} parent=1 // pred_region
      _
    $region57: #{model_forward.1} parent=1 // pred_fallthru
      _
    // Predicated region
    $region58: #{model_forward.1} parent=1 // pred_check
      _
    $region59: #{model_forward.1} parent=1 // pred_check_branch
      %54 = sbr.rel (0) target = $region61
    $region60: #{model_forward.1} parent=1 // pred_region
      _
    $region61: #{model_forward.1} parent=1 // pred_fallthru
      _
    // Predicated region
    $region62: #{model_forward.1} parent=1 // pred_check
      _
    $region63: #{model_forward.1} parent=1 // pred_check_branch
      %56 = sbr.rel (0) target = $region65
    $region64: #{model_forward.1} parent=1 // pred_region
      _
    $region65: #{model_forward.1} parent=1 // pred_fallthru
      _
    // Predicated region
    $region66: #{model_forward.1} parent=1 // pred_check
      _
    $region67: #{model_forward.1} parent=1 // pred_check_branch
      %58 = sbr.rel (0) target = $region69
    $region68: #{model_forward.1} parent=1 // pred_region
      _
    $region69: #{model_forward.1} parent=1 // pred_fallthru
      _
    // Predicated region
    $region70: #{model_forward.1} parent=1 // pred_check
      _
    $region71: #{model_forward.1} parent=1 // pred_check_branch
      %60 = sbr.rel (0) target = $region73
    $region72: #{model_forward.1} parent=1 // pred_region
      _
    $region73: #{model_forward.1} parent=1 // pred_fallthru
      _
    // Predicated region
    $region74: #{model_forward.1} parent=1 // pred_check
      _
    $region75: #{model_forward.1} parent=1 // pred_check_branch
      %62 = sbr.rel (0) target = $region77
    $region76: #{model_forward.1} parent=1 // pred_region
      _
    $region77: #{model_forward.1} parent=1 // pred_fallthru
      _
    %v63 = vld [vmem:[%s0] sm:$0xf]
    %v64 = vld [vmem:[%s0 + $0x4] sm:$0xf]
    %vm65 = vcmask 519168
    %v66 = vsel %vm65, %v63, 0.0
    %67 = vadd.xlane.f32.xlu0 %v66
    %v68 = vpop.xlane.xlu0 %67
    %v69 = vsel %vm65, %v64, 0.0
    %70 = vadd.xlane.f32.xlu0 %v69
    %v71 = vpop.xlane.xlu0 %70
    %v72 = vrcp.pop 64.0
    %v73 = vmul.f32 64.0, %v72
    %v74 = vsub.f32 1.0, %v73
    %v75 = vmul.f32 %v72, %v74
    %v76 = vadd.f32 %v72, %v75
    %vm77 = vweird.f32 %v72
    %v78 = vsel %vm77, %v72, %v76
    %v79 = vmul.f32 %v68, %v78
    %v80 = vmul.f32 %v71, %v78
    %v81 = vld [vmem:[%s3] sm:$0xf]
    %v82 = vld [vmem:[%s4] sm:$0x1]
    %v84 = vperm.slane %v82, 0
    %v88 = vlaneseq
    %v89 = vand.u32 %v88, 127
    %v90 = vperm.slane %v79, %v89
    %v91 = vperm.slane %v80, %v89
    %vm92 = vcmask 1041409
    %v93 = vsel %vm92, %v91, %v90
    %vm94 = vcmask 31744
    %v95 = vsel %vm94, %v93, 0
    %vm97 = vcmask 1043456
    %v99 = vsel %vm97, %v81, 0
    %101 = vmatpush.msra.mxu0 0.0
    %102 = vmatpush.msra.mxu0 0.0
    %103 = vmatpush.msra.mxu0 0.0
    %104 = vmatpush.msra.mxu0 0.0
    %105 = vmatpush.msra.mxu0 0.0
    %106 = vmatpush.msra.mxu0 0.0
    %107 = vmatpush.msra.mxu0 0.0
    %108 = vmatpush.msra.mxu0 0.0
    %109 = vmatpush.msra.mxu0 0.0
    %110 = vmatpush.msra.mxu0 0.0
    %111 = vmatpush.msra.mxu0 0.0
    %112 = vmatpush.msra.mxu0 0.0
    %113 = vmatpush.msra.mxu0 0.0
    %114 = vmatpush.msra.mxu0 0.0
    %115 = vmatpush.msra.mxu0 0.0
    %116 = vmatpush.msra.mxu0 %v99
    %117 = vmatmul.f32.gmra.mxu0 %v95
    %v118 = vpop.f32.mrf.mxu0
    %v119 = vadd.f32 %v84, %v118
    %120 = vdwg.mxu0
    %v121 = vld [vmem:[%s1] sm:$0x3]
    %v122 = vld [vmem:[%s5] sm:$0xff]
    %v123 = vld [vmem:[%s5 + $0x8] sm:$0xff]
    %v124 = vld [vmem:[%s6] sm:$0x1]
    %v126 = vperm.slane %v124, 0
    %vm128 = vcmask 130048
    %v130 = vsel %vm128, %v121, 0
    %132 = vmatpush.msra.mxu0 0.0
    %133 = vmatpush.msra.mxu0 0.0
    %134 = vmatpush.msra.mxu0 0.0
    %135 = vmatpush.msra.mxu0 0.0
    %136 = vmatpush.msra.mxu0 0.0
    %137 = vmatpush.msra.mxu0 0.0
    %138 = vmatpush.msra.mxu0 0.0
    %139 = vmatpush.msra.mxu0 0.0
    %140 = vmatpush.msra.mxu0 0.0
    %141 = vmatpush.msra.mxu0 0.0
    %142 = vmatpush.msra.mxu0 0.0
    %143 = vmatpush.msra.mxu0 0.0
    %144 = vmatpush.msra.mxu0 0.0
    %145 = vmatpush.msra.mxu0 0.0
    %146 = vmatpush.msra.mxu0 %v123
    %147 = vmatpush.msra.mxu0 %v122
    %148 = vmatmul.f32.gmra.mxu0 %v130
    %v149 = vpop.f32.mrf.mxu0
    %v150 = vadd.f32 %v126, %v149
    %151 = vdwg.mxu0
    %v152 = vmax.f32 %v150, 0.0
    %v153 = vld [vmem:[%s7] sm:$0xff]
    %v154 = vld [vmem:[%s7 + $0x8] sm:$0xff]
    %v155 = vld [vmem:[%s7 + $0x10] sm:$0xff]
    %v156 = vld [vmem:[%s7 + $0x18] sm:$0xff]
    %v157 = vld [vmem:[%s8] sm:$0x1]
    %v159 = vperm.slane %v157, 0
    %vm161 = vcmask 261120
    %v163 = vsel %vm161, %v152, 0
    %165 = vmatpush.msra.mxu0 0.0
    %166 = vmatpush.msra.mxu0 0.0
    %167 = vmatpush.msra.mxu0 0.0
    %168 = vmatpush.msra.mxu0 0.0
    %169 = vmatpush.msra.mxu0 0.0
    %170 = vmatpush.msra.mxu0 0.0
    %171 = vmatpush.msra.mxu0 0.0
    %172 = vmatpush.msra.mxu0 0.0
    %173 = vmatpush.msra.mxu0 0.0
    %174 = vmatpush.msra.mxu0 0.0
    %175 = vmatpush.msra.mxu0 0.0
    %176 = vmatpush.msra.mxu0 0.0
    %177 = vmatpush.msra.mxu0 %v156
    %178 = vmatpush.msra.mxu0 %v155
    %179 = vmatpush.msra.mxu0 %v154
    %180 = vmatpush.msra.mxu0 %v153
    %181 = vmatmul.f32.gmra.mxu0 %v163
    %v182 = vpop.f32.mrf.mxu0
    %v183 = vadd.f32 %v159, %v182
    %184 = vdwg.mxu0
    %v185 = vmax.f32 %v183, 0.0
    %v186 = vld [vmem:[%s2] sm:$0xff]
    %v187 = vld [vmem:[%s9] sm:$0xff]
    %v188 = vld [vmem:[%s9 + $0x8] sm:$0xff]
    %v189 = vld [vmem:[%s9 + $0x10] sm:$0xff]
    %v190 = vld [vmem:[%s9 + $0x18] sm:$0xff]
    %v191 = vld [vmem:[%s9 + $0x20] sm:$0xff]
    %v192 = vld [vmem:[%s9 + $0x28] sm:$0xff]
    %v193 = vld [vmem:[%s10] sm:$0x1]
    %v195 = vperm.slane %v193, 0
    %vm197 = vcmask 392192
    %v199 = vsel %vm197, %v186, 0
    %201 = vmatpush.msra.mxu0 0.0
    %202 = vmatpush.msra.mxu0 0.0
    %203 = vmatpush.msra.mxu0 0.0
    %204 = vmatpush.msra.mxu0 0.0
    %205 = vmatpush.msra.mxu0 0.0
    %206 = vmatpush.msra.mxu0 0.0
    %207 = vmatpush.msra.mxu0 0.0
    %208 = vmatpush.msra.mxu0 0.0
    %209 = vmatpush.msra.mxu0 0.0
    %210 = vmatpush.msra.mxu0 0.0
    %211 = vmatpush.msra.mxu0 %v192
    %212 = vmatpush.msra.mxu0 %v191
    %213 = vmatpush.msra.mxu0 %v190
    %214 = vmatpush.msra.mxu0 %v189
    %215 = vmatpush.msra.mxu0 %v188
    %216 = vmatpush.msra.mxu0 %v187
    %217 = vmatmul.f32.gmra.mxu0 %v199
    %v218 = vpop.f32.mrf.mxu0
    %v219 = vadd.f32 %v195, %v218
    %220 = vdwg.mxu0
    %v221 = vld [vmem:[%s11] sm:$0xff]
    %v222 = vld [vmem:[%s11 + $0x8] sm:$0xff]
    %v223 = vld [vmem:[%s11 + $0x10] sm:$0xff]
    %v224 = vld [vmem:[%s11 + $0x18] sm:$0xff]
    %v226 = vsel %vm161, 0.0, 0
    %228 = vmatpush.msra.mxu0 0.0
    %229 = vmatpush.msra.mxu0 0.0
    %230 = vmatpush.msra.mxu0 0.0
    %231 = vmatpush.msra.mxu0 0.0
    %232 = vmatpush.msra.mxu0 0.0
    %233 = vmatpush.msra.mxu0 0.0
    %234 = vmatpush.msra.mxu0 0.0
    %235 = vmatpush.msra.mxu0 0.0
    %236 = vmatpush.msra.mxu0 0.0
    %237 = vmatpush.msra.mxu0 0.0
    %238 = vmatpush.msra.mxu0 0.0
    %239 = vmatpush.msra.mxu0 0.0
    %240 = vmatpush.msra.mxu0 %v224
    %241 = vmatpush.msra.mxu0 %v223
    %242 = vmatpush.msra.mxu0 %v222
    %243 = vmatpush.msra.mxu0 %v221
    %244 = vmatmul.f32.gmra.mxu0 %v226
    %v245 = vpop.f32.mrf.mxu0
    %v246 = vadd.f32 0.0, %v245
    %247 = vdwg.mxu0
    %v248 = vadd.f32 %v219, %v246
    %v249 = vxor.u32 %v248, 2147483648
    %v250 = vmul.f32 %v249, 1.442695
    %v251 = vpow.pop %v250
    %v252 = vadd.f32 %v251, 1.0
    %v253 = vrcp.pop %v252
    %v254 = vmul.f32 %v252, %v253
    %v255 = vsub.f32 1.0, %v254
    %v256 = vmul.f32 %v253, %v255
    %v257 = vadd.f32 %v253, %v256
    %vm258 = vweird.f32 %v252
    %vm259 = vweird.f32 %v253
    %vm260 = vmor %vm258, %vm259
    %v261 = vsel %vm260, %v253, %v257
    %v262 = vand.u32 2147483647, %v252
    %vm263 = vcmp.eq.f32.partialorder %v262, 8.507059e+37
    %v264 = vand.u32 %v252, 2147483648
    %v265 = vor.u32 1.1754944e-38, %v264
    %v266 = vsel %vm263, %v265, %v261
    %v267 = vmul.f32 1.0, %v266
    %v268 = vtanh.pop %v248
    %v269 = vmul.f32 %v267, 0.0
    %271 = vrot.lane.b32.xlu0 %v268, 64
    %v272 = vpop.permute.xlu0 %271
    %v274 = vmul.f32 %v267, %v272
    %276 = vrot.lane.b32.xlu0 %v274, 32
    %v277 = vpop.permute.xlu0 %276
    %v279 = vadd.f32 %v269, %v277
    %v280 = vtanh.pop %v279
    %282 = vrot.lane.b32.xlu0 %v280, 64
    %v283 = vpop.permute.xlu0 %282
    %v285 = vmul.f32 %v267, %v283
    %287 = vrot.lane.b32.xlu0 %v285, 32
    %v288 = vpop.permute.xlu0 %287
    %v289 = vsel %vm161, %v288, 0
    %291 = vmatpush.msra.mxu0 0.0
    %292 = vmatpush.msra.mxu0 0.0
    %293 = vmatpush.msra.mxu0 0.0
    %294 = vmatpush.msra.mxu0 0.0
    %295 = vmatpush.msra.mxu0 0.0
    %296 = vmatpush.msra.mxu0 0.0
    %297 = vmatpush.msra.mxu0 0.0
    %298 = vmatpush.msra.mxu0 0.0
    %299 = vmatpush.msra.mxu0 0.0
    %300 = vmatpush.msra.mxu0 0.0
    %301 = vmatpush.msra.mxu0 0.0
    %302 = vmatpush.msra.mxu0 0.0
    %303 = vmatpush.msra.mxu0 %v224
    %304 = vmatpush.msra.mxu0 %v223
    %305 = vmatpush.msra.mxu0 %v222
    %306 = vmatpush.msra.mxu0 %v221
    %307 = vmatmul.f32.gmra.mxu0 %v289
    %v308 = vpop.f32.mrf.mxu0
    %v309 = vadd.f32 0.0, %v308
    %310 = vdwg.mxu0
    %v312 = vrot.slane %v309, 6
    %v314 = vadd.f32 %v219, %v312
    %v315 = vxor.u32 %v314, 2147483648
    %v316 = vmul.f32 %v315, 1.442695
    %v317 = vpow.pop %v316
    %v318 = vadd.f32 %v317, 1.0
    %v319 = vrcp.pop %v318
    %v320 = vmul.f32 %v318, %v319
    %v321 = vsub.f32 1.0, %v320
    %v322 = vmul.f32 %v319, %v321
    %v323 = vadd.f32 %v319, %v322
    %vm324 = vweird.f32 %v318
    %vm325 = vweird.f32 %v319
    %vm326 = vmor %vm324, %vm325
    %v327 = vsel %vm326, %v319, %v323
    %v328 = vand.u32 2147483647, %v318
    %vm329 = vcmp.eq.f32.partialorder %v328, 8.507059e+37
    %v330 = vand.u32 %v318, 2147483648
    %v331 = vor.u32 1.1754944e-38, %v330
    %v332 = vsel %vm329, %v331, %v327
    %v333 = vmul.f32 1.0, %v332
    %v334 = vtanh.pop %v314
    %v336 = vrot.slane %v279, 6
    %v338 = vmul.f32 %v333, %v336
    %340 = vrot.lane.b32.xlu0 %v334, 64
    %v341 = vpop.permute.xlu0 %340
    %v343 = vmul.f32 %v333, %v341
    %345 = vrot.lane.b32.xlu0 %v343, 32
    %v346 = vpop.permute.xlu0 %345
    %v348 = vadd.f32 %v338, %v346
    %v349 = vtanh.pop %v348
    %351 = vrot.lane.b32.xlu0 %v349, 64
    %v352 = vpop.permute.xlu0 %351
    %v354 = vmul.f32 %v333, %v352
    %v356 = vrot.slane %v354, 2
    %357 = vrot.lane.b32.xlu0 %v356, 32
    %v358 = vpop.permute.xlu0 %357
    %v359 = vsel %vm161, %v358, 0
    %361 = vmatpush.msra.mxu0 0.0
    %362 = vmatpush.msra.mxu0 0.0
    %363 = vmatpush.msra.mxu0 0.0
    %364 = vmatpush.msra.mxu0 0.0
    %365 = vmatpush.msra.mxu0 0.0
    %366 = vmatpush.msra.mxu0 0.0
    %367 = vmatpush.msra.mxu0 0.0
    %368 = vmatpush.msra.mxu0 0.0
    %369 = vmatpush.msra.mxu0 0.0
    %370 = vmatpush.msra.mxu0 0.0
    %371 = vmatpush.msra.mxu0 0.0
    %372 = vmatpush.msra.mxu0 0.0
    %373 = vmatpush.msra.mxu0 %v224
    %374 = vmatpush.msra.mxu0 %v223
    %375 = vmatpush.msra.mxu0 %v222
    %376 = vmatpush.msra.mxu0 %v221
    %377 = vmatmul.f32.gmra.mxu0 %v359
    %v378 = vpop.f32.mrf.mxu0
    %v379 = vadd.f32 0.0, %v378
    %380 = vdwg.mxu0
    %v382 = vrot.slane %v379, 4
    %v384 = vadd.f32 %v219, %v382
    %v385 = vxor.u32 %v384, 2147483648
    %v386 = vmul.f32 %v385, 1.442695
    %v387 = vpow.pop %v386
    %v388 = vadd.f32 %v387, 1.0
    %v389 = vrcp.pop %v388
    %v390 = vmul.f32 %v388, %v389
    %v391 = vsub.f32 1.0, %v390
    %v392 = vmul.f32 %v389, %v391
    %v393 = vadd.f32 %v389, %v392
    %vm394 = vweird.f32 %v388
    %vm395 = vweird.f32 %v389
    %vm396 = vmor %vm394, %vm395
    %v397 = vsel %vm396, %v389, %v393
    %v398 = vand.u32 2147483647, %v388
    %vm399 = vcmp.eq.f32.partialorder %v398, 8.507059e+37
    %v400 = vand.u32 %v388, 2147483648
    %v401 = vor.u32 1.1754944e-38, %v400
    %v402 = vsel %vm399, %v401, %v397
    %v403 = vmul.f32 1.0, %v402
    %v404 = vtanh.pop %v384
    %v406 = vrot.slane %v348, 6
    %v408 = vmul.f32 %v403, %v406
    %410 = vrot.lane.b32.xlu0 %v404, 64
    %v411 = vpop.permute.xlu0 %410
    %v413 = vmul.f32 %v403, %v411
    %415 = vrot.lane.b32.xlu0 %v413, 32
    %v416 = vpop.permute.xlu0 %415
    %v418 = vadd.f32 %v408, %v416
    %v419 = vtanh.pop %v418
    %421 = vrot.lane.b32.xlu0 %v419, 64
    %v422 = vpop.permute.xlu0 %421
    %v424 = vmul.f32 %v403, %v422
    %v425 = vld [vmem:[%s2 + $0x6] sm:$0x3]
    %v426 = vld [vmem:[%s12] sm:$0xff]
    %v427 = vld [vmem:[%s12 + $0x8] sm:$0xff]
    %v428 = vld [vmem:[%s12 + $0x10] sm:$0xff]
    %v429 = vld [vmem:[%s12 + $0x18] sm:$0xff]
    %v430 = vld [vmem:[%s12 + $0x20] sm:$0xff]
    %v431 = vld [vmem:[%s12 + $0x28] sm:$0xff]
    %v432 = vld [vmem:[%s13] sm:$0xff]
    %v433 = vld [vmem:[%s13 + $0x8] sm:$0xff]
    %v434 = vld [vmem:[%s13 + $0x10] sm:$0xff]
    %v435 = vld [vmem:[%s13 + $0x18] sm:$0xff]
    %v437 = vrot.slane %v424, 4
    %438 = vrot.lane.b32.xlu0 %v437, 32
    %v439 = vpop.permute.xlu0 %438
    %v440 = vsel %vm161, %v439, 0
    %442 = vmatpush.msra.mxu0 0.0
    %443 = vmatpush.msra.mxu0 0.0
    %444 = vmatpush.msra.mxu0 0.0
    %445 = vmatpush.msra.mxu0 0.0
    %446 = vmatpush.msra.mxu0 0.0
    %447 = vmatpush.msra.mxu0 0.0
    %448 = vmatpush.msra.mxu0 0.0
    %449 = vmatpush.msra.mxu0 0.0
    %450 = vmatpush.msra.mxu0 0.0
    %451 = vmatpush.msra.mxu0 0.0
    %452 = vmatpush.msra.mxu0 0.0
    %453 = vmatpush.msra.mxu0 0.0
    %454 = vmatpush.msra.mxu0 %v435
    %455 = vmatpush.msra.mxu0 %v434
    %456 = vmatpush.msra.mxu0 %v433
    %457 = vmatpush.msra.mxu0 %v432
    %458 = vmatmul.f32.gmra.mxu0 %v440
    %v459 = vpop.f32.mrf.mxu0
    %v460 = vadd.f32 0.0, %v459
    %461 = vdwg.mxu0
    %v463 = vsel %vm197, %v425, 0
    %465 = vmatpush.msra.mxu0 0.0
    %466 = vmatpush.msra.mxu0 0.0
    %467 = vmatpush.msra.mxu0 0.0
    %468 = vmatpush.msra.mxu0 0.0
    %469 = vmatpush.msra.mxu0 0.0
    %470 = vmatpush.msra.mxu0 0.0
    %471 = vmatpush.msra.mxu0 0.0
    %472 = vmatpush.msra.mxu0 0.0
    %473 = vmatpush.msra.mxu0 0.0
    %474 = vmatpush.msra.mxu0 0.0
    %475 = vmatpush.msra.mxu0 %v431
    %476 = vmatpush.msra.mxu0 %v430
    %477 = vmatpush.msra.mxu0 %v429
    %478 = vmatpush.msra.mxu0 %v428
    %479 = vmatpush.msra.mxu0 %v427
    %480 = vmatpush.msra.mxu0 %v426
    %481 = vmatmul.f32.gmra.mxu0 %v463
    %v482 = vpop.f32.mrf.mxu0
    %v483 = vadd.f32 %v460, %v482
    %484 = vdwg.mxu0
    %v485 = vld [vmem:[%s14] sm:$0x1]
    %v487 = vperm.slane %v485, 0
    %v489 = vadd.f32 %v483, %v487
    %v490 = vld [vmem:[%s15] sm:$0xff]
    %v491 = vld [vmem:[%s15 + $0x8] sm:$0xff]
    %v492 = vld [vmem:[%s15 + $0x10] sm:$0xff]
    %v493 = vld [vmem:[%s15 + $0x18] sm:$0xff]
    %v494 = vld [vmem:[%s15 + $0x20] sm:$0xff]
    %v495 = vld [vmem:[%s15 + $0x28] sm:$0xff]
    %v496 = vld [vmem:[%s15 + $0x30] sm:$0xff]
    %v497 = vld [vmem:[%s15 + $0x38] sm:$0xff]
    %v498 = vld [vmem:[%s16] sm:$0xff]
    %v499 = vld [vmem:[%s16 + $0x8] sm:$0xff]
    %v500 = vld [vmem:[%s16 + $0x10] sm:$0xff]
    %v501 = vld [vmem:[%s16 + $0x18] sm:$0xff]
    %v502 = vld [vmem:[%s16 + $0x20] sm:$0xff]
    %v503 = vld [vmem:[%s16 + $0x28] sm:$0xff]
    %v504 = vld [vmem:[%s16 + $0x30] sm:$0xff]
    %v505 = vld [vmem:[%s16 + $0x38] sm:$0xff]
    %vm506 = vcmask 523264
    %v508 = vsel %vm506, %v185, 0
    %510 = vmatpush.msra.mxu0 0.0
    %511 = vmatpush.msra.mxu0 0.0
    %512 = vmatpush.msra.mxu0 0.0
    %513 = vmatpush.msra.mxu0 0.0
    %514 = vmatpush.msra.mxu0 0.0
    %515 = vmatpush.msra.mxu0 0.0
    %516 = vmatpush.msra.mxu0 0.0
    %517 = vmatpush.msra.mxu0 0.0
    %518 = vmatpush.msra.mxu0 %v505
    %519 = vmatpush.msra.mxu0 %v504
    %520 = vmatpush.msra.mxu0 %v503
    %521 = vmatpush.msra.mxu0 %v502
    %522 = vmatpush.msra.mxu0 %v501
    %523 = vmatpush.msra.mxu0 %v500
    %524 = vmatpush.msra.mxu0 %v499
    %525 = vmatpush.msra.mxu0 %v498
    %526 = vmatmul.f32.gmra.mxu0 %v508
    %v527 = vpop.f32.mrf.mxu0
    %v528 = vadd.f32 0.0, %v527
    %529 = vdwg.mxu0
    %v531 = vsel %vm506, %v119, 0
    %533 = vmatpush.msra.mxu0 0.0
    %534 = vmatpush.msra.mxu0 0.0
    %535 = vmatpush.msra.mxu0 0.0
    %536 = vmatpush.msra.mxu0 0.0
    %537 = vmatpush.msra.mxu0 0.0
    %538 = vmatpush.msra.mxu0 0.0
    %539 = vmatpush.msra.mxu0 0.0
    %540 = vmatpush.msra.mxu0 0.0
    %541 = vmatpush.msra.mxu0 %v497
    %542 = vmatpush.msra.mxu0 %v496
    %543 = vmatpush.msra.mxu0 %v495
    %544 = vmatpush.msra.mxu0 %v494
    %545 = vmatpush.msra.mxu0 %v493
    %546 = vmatpush.msra.mxu0 %v492
    %547 = vmatpush.msra.mxu0 %v491
    %548 = vmatpush.msra.mxu0 %v490
    %549 = vmatmul.f32.gmra.mxu0 %v531
    %v550 = vpop.f32.mrf.mxu0
    %v551 = vadd.f32 %v528, %v550
    %552 = vdwg.mxu0
    %v553 = vld [vmem:[%s17] sm:$0xff]
    %v554 = vld [vmem:[%s17 + $0x8] sm:$0xff]
    %v555 = vld [vmem:[%s17 + $0x10] sm:$0xff]
    %v556 = vld [vmem:[%s17 + $0x18] sm:$0xff]
    %v558 = vsel %vm161, %v489, 0
    %560 = vmatpush.msra.mxu0 0.0
    %561 = vmatpush.msra.mxu0 0.0
    %562 = vmatpush.msra.mxu0 0.0
    %563 = vmatpush.msra.mxu0 0.0
    %564 = vmatpush.msra.mxu0 0.0
    %565 = vmatpush.msra.mxu0 0.0
    %566 = vmatpush.msra.mxu0 0.0
    %567 = vmatpush.msra.mxu0 0.0
    %568 = vmatpush.msra.mxu0 0.0
    %569 = vmatpush.msra.mxu0 0.0
    %570 = vmatpush.msra.mxu0 0.0
    %571 = vmatpush.msra.mxu0 0.0
    %572 = vmatpush.msra.mxu0 %v556
    %573 = vmatpush.msra.mxu0 %v555
    %574 = vmatpush.msra.mxu0 %v554
    %575 = vmatpush.msra.mxu0 %v553
    %576 = vmatmul.f32.gmra.mxu0 %v558
    %v577 = vpop.f32.mrf.mxu0
    %v578 = vadd.f32 0.0, %v577
    %579 = vdwg.mxu0
    %v580 = vadd.f32 %v551, %v578
    %v581 = vld [vmem:[%s18] sm:$0x1]
    %v583 = vperm.slane %v581, 0
    %v585 = vadd.f32 %v580, %v583
    %vm586 = vcmask 58368
    %587 = vst.msk [vmem:[#allocation2] sm:$0x3] %vm586, %v585
    // Predicated region
    $region78: #{model_forward.1} parent=1 // pred_check
      _
    $region79: #{model_forward.1} parent=1 // pred_check_branch
      %589 = sbr.rel (0) target = $region81
    $region80: #{model_forward.1} parent=1 // pred_region
      %591 = vsyncadd [#allocation3], 0
      %s593 = sshll.u32 [#allocation2], 4
      %s594 = int_to_ptr.vmem [resolvable:$true] %s593
      %s595 = sshll.u32 %s19, 4
      %s596 = int_to_ptr.hbm [resolvable:$true] %s595
      %598 = dma.vmem_to_hbm [thread:$0]  %s594, 32, %s596, [#allocation3]
    $region81: #{model_forward.1} parent=1 // pred_fallthru
      _
    // Predicated region
    $region82: #{model_forward.1} parent=1 // pred_check
      _
    $region83: #{model_forward.1} parent=1 // pred_check_branch
      %600 = sbr.rel (0) target = $region85
    $region84: #{model_forward.1} parent=1 // pred_region
      %602 = dma.done [#allocation3], 32
    $region85: #{model_forward.1} parent=1 // pred_fallthru
      _
    %603 = vsyncpa [#allocation3], 1

</llo_original>
